<compile_context>
chip_gen: v7x
topology: tpu7x:2x2x1
jax: 0.10.0
libtpu: 0.0.40
codegen_flags: <defaults>
</compile_context>

<pallas_src>
import functools

import jax
import jax.numpy as jnp
from jax.experimental import pallas as pl
from jax.experimental.pallas import tpu as pltpu


# ----------------------------------------------------------------------------
# Helpers
# ----------------------------------------------------------------------------
def _round_up(x, m):
    return ((x + m - 1) // m) * m


def _pad2(a, rows, cols):
    return jnp.pad(a, ((0, rows - a.shape[0]), (0, cols - a.shape[1])))


# Conservative tile budget: fits inside v7x's 64 MiB physical / 32 MiB scoped
# VMEM with headroom (v5e/v6e have 128 MiB, so always fine there).
_VMEM_TILE_BUDGET = 24 * 1024 * 1024
_VMEM_LIMIT_CAP = 32 * 1024 * 1024  # do not exceed v7x scoped default


def _layer_vmem_bytes(n_pad, f_in, f_out, tm, tk, x_resident, out_itemsize):
    """Double-buffered input/output tiles + resident operands + f32 accumulator."""
    a_bytes = 2 * tm * tk * 2                                   # A_hat tiles (bf16)
    x_bytes = 2 * (n_pad * f_in * 2 if x_resident else tk * f_in * 2)
    w_bytes = 2 * f_in * f_out * 2                              # W (resident, bf16)
    b_bytes = 2 * f_out * 4                                     # bias (f32)
    o_bytes = 2 * tm * f_out * out_itemsize                     # output tiles
    acc_bytes = tm * f_out * 4                                  # accumulator scratch
    return a_bytes + x_bytes + w_bytes + b_bytes + o_bytes + acc_bytes


def _plan_layer(n_pad, f_in, f_out, out_itemsize):
    """Pick (tm, tk, x_resident): big row tiles first (kills re-stream + output
    traffic), then prefer VMEM-resident X, then the deepest k tile that fits."""
    tms = [t for t in (1024, 512, 256, 128) if n_pad % t == 0] or [128]
    tks = [t for t in (2048, 1024, 512, 256, 128) if n_pad % t == 0] or [128]
    for tm in tms:
        for x_resident in (True, False):
            for tk in tks:
                if (
                    _layer_vmem_bytes(n_pad, f_in, f_out, tm, tk, x_resident, out_itemsize)
                    <= _VMEM_TILE_BUDGET
                ):
                    return tm, tk, x_resident
    return 128, 128, False


# ----------------------------------------------------------------------------
# Fused GCN layer kernel:  Y = A_hat @ (X @ W) + b   (+ optional ReLU)
#   grid = (row tiles i, k-reduction tiles k); the XW k-slab is recomputed per
#   row tile (W resident in VMEM) - the extra MXU flops hide under the
#   HBM-bound A_hat stream. f32 accumulator resident in scratch.
# ----------------------------------------------------------------------------
def _gcn_fused_kernel(a_ref, x_ref, w_ref, b_ref, o_ref, acc_ref, *,
                      apply_relu, x_resident, tk):
    k = pl.program_id(1)

    @pl.when(k == 0)
    def _():
        acc_ref[...] = jnp.zeros_like(acc_ref)

    if x_resident:
        # X is fully resident in VMEM; slice the current k-slab of rows.
        start = pl.multiple_of(k * tk, tk)
        x_blk = x_ref[pl.ds(start, tk), :]
    else:
        x_blk = x_ref[...]

    # Transform: XW k-slab (f32 acc on MXU, cast bf16 to match ref numerics).
    xw = jnp.dot(
        x_blk, w_ref[...], preferred_element_type=jnp.float32
    ).astype(jnp.bfloat16)

    # Aggregate: partial A_hat @ XW contribution into the f32 accumulator.
    acc_ref[...] += jnp.dot(
        a_ref[...], xw, preferred_element_type=jnp.float32
    )

    @pl.when(k == pl.num_programs(1) - 1)
    def _():
        out = acc_ref[...] + b_ref[...].astype(jnp.float32)  # f32 epilogue
        if apply_relu:
            out = jnp.maximum(out, 0.0)
        o_ref[...] = out.astype(o_ref.dtype)


def gcn_layer(a_hat, x, w, b, *, apply_relu, out_dtype):
    n_pad = a_hat.shape[0]
    f_in = x.shape[1]
    f_out = w.shape[1]
    out_itemsize = jnp.dtype(out_dtype).itemsize

    tm, tk, x_resident = _plan_layer(n_pad, f_in, f_out, out_itemsize)
    grid = (n_pad // tm, n_pad // tk)

    kernel = functools.partial(
        _gcn_fused_kernel, apply_relu=apply_relu, x_resident=x_resident, tk=tk
    )

    if x_resident:
        x_spec = pl.BlockSpec((n_pad, f_in), lambda i, k: (0, 0))   # loaded once
        x_stream_bytes = n_pad * f_in * 2
    else:
        x_spec = pl.BlockSpec((tk, f_in), lambda i, k: (k, 0))      # k-slab stream
        x_stream_bytes = (n_pad // tm) * n_pad * f_in * 2

    vmem_bytes = _layer_vmem_bytes(n_pad, f_in, f_out, tm, tk, x_resident, out_itemsize)
    vmem_limit = int(min(max(2 * vmem_bytes, 16 * 1024 * 1024), _VMEM_LIMIT_CAP))

    return pl.pallas_call(
        kernel,
        out_shape=jax.ShapeDtypeStruct((n_pad, f_out), out_dtype),
        grid_spec=pltpu.PrefetchScalarGridSpec(
            num_scalar_prefetch=0,
            grid=grid,
            in_specs=[
                pl.BlockSpec((tm, tk), lambda i, k: (i, k)),        # A_hat tile
                x_spec,                                             # X (resident / slab)
                pl.BlockSpec((f_in, f_out), lambda i, k: (0, 0)),   # W (resident)
                pl.BlockSpec((1, f_out), lambda i, k: (0, 0)),      # bias (resident)
            ],
            out_specs=pl.BlockSpec((tm, f_out), lambda i, k: (i, 0)),
            scratch_shapes=[pltpu.VMEM((tm, f_out), jnp.float32)],
        ),
        compiler_params=pltpu.CompilerParams(
            dimension_semantics=("parallel", "arbitrary"),
            vmem_limit_bytes=vmem_limit,
        ),
        cost_estimate=pl.CostEstimate(
            flops=2 * n_pad * n_pad * f_out
            + 2 * (n_pad // tm) * n_pad * f_in * f_out,             # XW recompute
            transcendentals=0,
            bytes_accessed=n_pad * n_pad * 2                        # A_hat stream
            + x_stream_bytes                                        # actual X traffic
            + f_in * f_out * 2                                      # W
            + f_out * 4                                             # bias
            + n_pad * f_out * out_itemsize,                         # output
        ),
    )(a_hat, x, w, b)


# ----------------------------------------------------------------------------
# Glue: dense normalized adjacency from edge_index (plain JAX, not hot path)
# ----------------------------------------------------------------------------
def build_normalized_adjacency(edge_index, num_nodes):
    """A_hat = D^{-1/2} (A' + I) D^{-1/2}, PyG gcn_norm semantics.

    edge_index: int32 [2, E], edge_index[0]=source, edge_index[1]=target.
    Duplicate (non-self-loop) edges are summed; existing self-loops are
    replaced by exactly one unit self-loop per node (add_remaining_self_loops).
    """
    src, dst = edge_index[0], edge_index[1]
    a = jnp.zeros((num_nodes, num_nodes), dtype=jnp.float32)
    a = a.at[dst, src].add(1.0)                 # message flows source -> target
    eye = jnp.eye(num_nodes, dtype=jnp.float32)
    a = a * (1.0 - eye) + eye                   # drop existing self-loops, add unit ones
    deg = jnp.sum(a, axis=1)
    dis = jnp.where(deg > 0, 1.0 / jnp.sqrt(deg), 0.0)
    return dis[:, None] * a * dis[None, :]


# ----------------------------------------------------------------------------
# Parameter init (glorot weights / zero bias, like PyG GCNConv)
# ----------------------------------------------------------------------------
def glorot(key, fan_in, fan_out):
    limit = jnp.sqrt(6.0 / (fan_in + fan_out))
    return jax.random.uniform(
        key, (fan_in, fan_out), dtype=jnp.float32, minval=-limit, maxval=limit
    )


def init_gcn_params(key, num_features, hidden_channels, num_classes):
    k1, k2, k3 = jax.random.split(key, 3)
    return {
        "w1": glorot(k1, num_features, hidden_channels),
        "b1": jnp.zeros((1, hidden_channels), jnp.float32),
        "w2": glorot(k2, hidden_channels, hidden_channels),
        "b2": jnp.zeros((1, hidden_channels), jnp.float32),
        "w3": glorot(k3, hidden_channels, num_classes),
        "b3": jnp.zeros((1, num_classes), jnp.float32),
    }


# ----------------------------------------------------------------------------
# GCN forward: conv1 -> relu -> conv2 -> relu -> conv3
# ----------------------------------------------------------------------------
@jax.jit
def gcn_forward(params, x, a_hat):
    n, f_in = x.shape
    hidden = params["w1"].shape[1]
    n_classes = params["w3"].shape[1]

    # Pad to lane/tile-friendly shapes (zeros are semantically inert).
    n_pad = max(_round_up(n, 128), 128)
    f_in_p = _round_up(f_in, 128)
    hid_p = _round_up(hidden, 128)
    cls_p = _round_up(n_classes, 128)

    a_p = _pad2(a_hat, n_pad, n_pad).astype(jnp.bfloat16)
    h = _pad2(x, n_pad, f_in_p).astype(jnp.bfloat16)

    w1 = _pad2(params["w1"], f_in_p, hid_p).astype(jnp.bfloat16)
    b1 = _pad2(params["b1"], 1, hid_p)
    w2 = _pad2(params["w2"], hid_p, hid_p).astype(jnp.bfloat16)
    b2 = _pad2(params["b2"], 1, hid_p)
    w3 = _pad2(params["w3"], hid_p, cls_p).astype(jnp.bfloat16)
    b3 = _pad2(params["b3"], 1, cls_p)

    # Three fused (transform + aggregate + bias [+ ReLU]) Pallas layers.
    h = gcn_layer(a_p, h, w1, b1, apply_relu=True, out_dtype=jnp.bfloat16)
    h = gcn_layer(a_p, h, w2, b2, apply_relu=True, out_dtype=jnp.bfloat16)
    out = gcn_layer(a_p, h, w3, b3, apply_relu=False, out_dtype=jnp.float32)

    return out[:n, :n_classes]


# Pure-JAX reference with matching bf16 casts (for a tight correctness check)
def gcn_forward_ref(params, x, a_hat):
    a = a_hat.astype(jnp.bfloat16)

    def layer(h, w, b, relu, out_dtype):
        xw = jnp.dot(
            h, w.astype(jnp.bfloat16), preferred_element_type=jnp.float32
        ).astype(jnp.bfloat16)
        out = jnp.dot(a, xw, preferred_element_type=jnp.float32) + b
        if relu:
            out = jnp.maximum(out, 0.0)
        return out.astype(out_dtype)

    h = layer(x.astype(jnp.bfloat16), params["w1"], params["b1"], True, jnp.bfloat16)
    h = layer(h, params["w2"], params["b2"], True, jnp.bfloat16)
    return layer(h, params["w3"], params["b3"], False, jnp.float32)


if __name__ == "__main__":
    # Small synthetic graph (ogbn-arxiv stand-in): 64 nodes, 16 input
    # features, 32 hidden channels, 8 classes, 256 random directed edges.
    NUM_NODES = 64
    NUM_FEATURES = 16
    HIDDEN_CHANNELS = 32
    NUM_CLASSES = 8
    NUM_EDGES = 256

    key = jax.random.PRNGKey(0)
    k_x, k_e, k_p = jax.random.split(key, 3)

    x = jax.random.normal(k_x, (NUM_NODES, NUM_FEATURES), dtype=jnp.float32)
    edge_index = jax.random.randint(
        k_e, (2, NUM_EDGES), minval=0, maxval=NUM_NODES, dtype=jnp.int32
    )

    params = init_gcn_params(k_p, NUM_FEATURES, HIDDEN_CHANNELS, NUM_CLASSES)
    a_hat = build_normalized_adjacency(edge_index, NUM_NODES)

    out = gcn_forward(params, x, a_hat)
    out = jax.block_until_ready(out)

    ref = gcn_forward_ref(params, x, a_hat)
    assert out.shape == (NUM_NODES, NUM_CLASSES)
    assert jnp.allclose(out, ref, atol=1e-2, rtol=1e-2), (
        float(jnp.max(jnp.abs(out - ref)))
    )

    print("KERNEL_OK")
</pallas_src>

<mosaic_0001>
module attributes {stable_mosaic.version = 11 : i64} {
  func.func @_gcn_fused_kernel(%arg0: i32, %arg1: i32, %arg2: memref<128x128xbf16, #tpu.memory_space<vmem>>, %arg3: memref<128x128xbf16, #tpu.memory_space<vmem>>, %arg4: memref<128x128xbf16, #tpu.memory_space<vmem>>, %arg5: memref<1x128xf32, #tpu.memory_space<vmem>>, %arg6: memref<128x128xf32, #tpu.memory_space<vmem>>, %arg7: memref<128x128xf32, #tpu.memory_space<vmem>>) attributes {dimension_semantics = [#tpu.dimension_semantics<parallel>, #tpu.dimension_semantics<arbitrary>], iteration_bounds = array<i64: 1, 1>, scalar_prefetch = 0 : i64, scratch_operands = 1 : i64, tpu.core_type = #tpu.core_type<tc>, window_params = [{transform_indices = @transform_0, window_bounds = array<i64: 128, 128>}, {pipeline_mode = #tpu.pipeline_mode<synchronous>, transform_indices = @transform_1, window_bounds = array<i64: 128, 128>}, {pipeline_mode = #tpu.pipeline_mode<synchronous>, transform_indices = @transform_2, window_bounds = array<i64: 128, 128>}, {pipeline_mode = #tpu.pipeline_mode<synchronous>, transform_indices = @transform_3, window_bounds = array<i64: 1, 128>}, {transform_indices = @transform_4, window_bounds = array<i64: 128, 128>}]} {
    %c0_i32 = arith.constant 0 : i32
    %0 = arith.cmpi eq, %arg1, %c0_i32 : i32
    %1 = arith.extui %0 : i1 to i32
    %c0_i32_0 = arith.constant 0 : i32
    %2 = arith.cmpi ne, %1, %c0_i32_0 : i32
    scf.if %2 {
      %cst_12 = arith.constant 0.000000e+00 : f32
      %18 = vector.broadcast %cst_12 : f32 to vector<128x128xf32>
      %c0_13 = arith.constant 0 : index
      %c0_14 = arith.constant 0 : index
      %19 = vector.load %arg7[%c0_13, %c0_14] : memref<128x128xf32, #tpu.memory_space<vmem>>, vector<128x128xf32>
      tpu.vector_store %arg7[%c0_13, %c0_14], %18 {strides = array<i32>} : memref<128x128xf32, #tpu.memory_space<vmem>>, vector<128x128xf32>,
    } else {
    }
    %c128_i32 = arith.constant 128 : i32
    %3 = arith.muli %arg1, %c128_i32 : i32
    %4 = tpu.assume_multiple %3, 128 : i32
    %5 = arith.index_cast %4 : i32 to index
    %c0 = arith.constant 0 : index
    %6 = vector.load %arg3[%5, %c0] : memref<128x128xbf16, #tpu.memory_space<vmem>>, vector<128x128xbf16>
    %c0_1 = arith.constant 0 : index
    %c0_2 = arith.constant 0 : index
    %7 = vector.load %arg4[%c0_1, %c0_2] : memref<128x128xbf16, #tpu.memory_space<vmem>>, vector<128x128xbf16>
    %cst = arith.constant dense<0.000000e+00> : vector<128x128xf32>
    %8 = tpu.matmul %6, %7, %cst {dimension_numbers = #tpu.dot_dimension_numbers<[1], [0], [0], [1], [0, 0, 1, 1], [], []>} : vector<128x128xbf16>, vector<128x128xbf16>, vector<128x128xf32> -> vector<128x128xf32>
    %9 = arith.truncf %8 : vector<128x128xf32> to vector<128x128xbf16>
    %c0_3 = arith.constant 0 : index
    %c0_4 = arith.constant 0 : index
    %10 = vector.load %arg7[%c0_3, %c0_4] : memref<128x128xf32, #tpu.memory_space<vmem>>, vector<128x128xf32>
    %c0_5 = arith.constant 0 : index
    %c0_6 = arith.constant 0 : index
    %11 = vector.load %arg2[%c0_5, %c0_6] : memref<128x128xbf16, #tpu.memory_space<vmem>>, vector<128x128xbf16>
    %cst_7 = arith.constant dense<0.000000e+00> : vector<128x128xf32>
    %12 = tpu.matmul %11, %9, %cst_7 {dimension_numbers = #tpu.dot_dimension_numbers<[1], [0], [0], [1], [0, 0, 1, 1], [], []>} : vector<128x128xbf16>, vector<128x128xbf16>, vector<128x128xf32> -> vector<128x128xf32>
    %13 = arith.addf %10, %12 : vector<128x128xf32>
    %c0_8 = arith.constant 0 : index
    %c0_9 = arith.constant 0 : index
    %14 = vector.load %arg7[%c0_8, %c0_9] : memref<128x128xf32, #tpu.memory_space<vmem>>, vector<128x128xf32>
    tpu.vector_store %arg7[%c0_8, %c0_9], %13 {strides = array<i32>} : memref<128x128xf32, #tpu.memory_space<vmem>>, vector<128x128xf32>,
    %c0_i32_10 = arith.constant 0 : i32
    %15 = arith.cmpi eq, %arg1, %c0_i32_10 : i32
    %16 = arith.extui %15 : i1 to i32
    %c0_i32_11 = arith.constant 0 : i32
    %17 = arith.cmpi ne, %16, %c0_i32_11 : i32
    scf.if %17 {
      %c0_12 = arith.constant 0 : index
      %c0_13 = arith.constant 0 : index
      %18 = vector.load %arg7[%c0_12, %c0_13] : memref<128x128xf32, #tpu.memory_space<vmem>>, vector<128x128xf32>
      %c0_14 = arith.constant 0 : index
      %c0_15 = arith.constant 0 : index
      %19 = vector.load %arg5[%c0_14, %c0_15] : memref<1x128xf32, #tpu.memory_space<vmem>>, vector<1x128xf32>
      %20 = vector.broadcast %19 : vector<1x128xf32> to vector<128x128xf32>
      %21 = arith.addf %18, %20 : vector<128x128xf32>
      %c0_16 = arith.constant 0 : index
      %c0_17 = arith.constant 0 : index
      %22 = vector.load %arg6[%c0_16, %c0_17] : memref<128x128xf32, #tpu.memory_space<vmem>>, vector<128x128xf32>
      tpu.vector_store %arg6[%c0_16, %c0_17], %21 {strides = array<i32>} : memref<128x128xf32, #tpu.memory_space<vmem>>, vector<128x128xf32>,
    } else {
    }
    return
  }
  func.func @transform_0(%arg0: i32, %arg1: i32) -> (i32, i32) {
    %c0_i32 = arith.constant 0 : i32
    return %arg0, %arg1 : i32, i32
  }
  func.func @transform_1(%arg0: i32, %arg1: i32) -> (i32, i32) {
    %c0_i32 = arith.constant 0 : i32
    %c0_i32_0 = arith.constant 0 : i32
    %c0_i32_1 = arith.constant 0 : i32
    return %c0_i32, %c0_i32_0 : i32, i32
  }
  func.func @transform_2(%arg0: i32, %arg1: i32) -> (i32, i32) {
    %c0_i32 = arith.constant 0 : i32
    %c0_i32_0 = arith.constant 0 : i32
    %c0_i32_1 = arith.constant 0 : i32
    return %c0_i32, %c0_i32_0 : i32, i32
  }
  func.func @transform_3(%arg0: i32, %arg1: i32) -> (i32, i32) {
    %c0_i32 = arith.constant 0 : i32
    %c0_i32_0 = arith.constant 0 : i32
    %c0_i32_1 = arith.constant 0 : i32
    return %c0_i32, %c0_i32_0 : i32, i32
  }
  func.func @transform_4(%arg0: i32, %arg1: i32) -> (i32, i32) {
    %c0_i32 = arith.constant 0 : i32
    %c0_i32_0 = arith.constant 0 : i32
    return %arg0, %c0_i32 : i32, i32
  }
}

module attributes {stable_mosaic.version = 11 : i64} {
  func.func @_gcn_fused_kernel(%arg0: i32, %arg1: i32, %arg2: memref<128x128xbf16, #tpu.memory_space<vmem>>, %arg3: memref<128x128xbf16, #tpu.memory_space<vmem>>, %arg4: memref<128x128xbf16, #tpu.memory_space<vmem>>, %arg5: memref<1x128xf32, #tpu.memory_space<vmem>>, %arg6: memref<128x128xbf16, #tpu.memory_space<vmem>>, %arg7: memref<128x128xf32, #tpu.memory_space<vmem>>) attributes {dimension_semantics = [#tpu.dimension_semantics<parallel>, #tpu.dimension_semantics<arbitrary>], iteration_bounds = array<i64: 1, 1>, scalar_prefetch = 0 : i64, scratch_operands = 1 : i64, tpu.core_type = #tpu.core_type<tc>, window_params = [{transform_indices = @transform_0, window_bounds = array<i64: 128, 128>}, {pipeline_mode = #tpu.pipeline_mode<synchronous>, transform_indices = @transform_1, window_bounds = array<i64: 128, 128>}, {pipeline_mode = #tpu.pipeline_mode<synchronous>, transform_indices = @transform_2, window_bounds = array<i64: 128, 128>}, {pipeline_mode = #tpu.pipeline_mode<synchronous>, transform_indices = @transform_3, window_bounds = array<i64: 1, 128>}, {transform_indices = @transform_4, window_bounds = array<i64: 128, 128>}]} {
    %c0_i32 = arith.constant 0 : i32
    %0 = arith.cmpi eq, %arg1, %c0_i32 : i32
    %1 = arith.extui %0 : i1 to i32
    %c0_i32_0 = arith.constant 0 : i32
    %2 = arith.cmpi ne, %1, %c0_i32_0 : i32
    scf.if %2 {
      %cst_12 = arith.constant 0.000000e+00 : f32
      %18 = vector.broadcast %cst_12 : f32 to vector<128x128xf32>
      %c0_13 = arith.constant 0 : index
      %c0_14 = arith.constant 0 : index
      %19 = vector.load %arg7[%c0_13, %c0_14] : memref<128x128xf32, #tpu.memory_space<vmem>>, vector<128x128xf32>
      tpu.vector_store %arg7[%c0_13, %c0_14], %18 {strides = array<i32>} : memref<128x128xf32, #tpu.memory_space<vmem>>, vector<128x128xf32>,
    } else {
    }
    %c128_i32 = arith.constant 128 : i32
    %3 = arith.muli %arg1, %c128_i32 : i32
    %4 = tpu.assume_multiple %3, 128 : i32
    %5 = arith.index_cast %4 : i32 to index
    %c0 = arith.constant 0 : index
    %6 = vector.load %arg3[%5, %c0] : memref<128x128xbf16, #tpu.memory_space<vmem>>, vector<128x128xbf16>
    %c0_1 = arith.constant 0 : index
    %c0_2 = arith.constant 0 : index
    %7 = vector.load %arg4[%c0_1, %c0_2] : memref<128x128xbf16, #tpu.memory_space<vmem>>, vector<128x128xbf16>
    %cst = arith.constant dense<0.000000e+00> : vector<128x128xf32>
    %8 = tpu.matmul %6, %7, %cst {dimension_numbers = #tpu.dot_dimension_numbers<[1], [0], [0], [1], [0, 0, 1, 1], [], []>} : vector<128x128xbf16>, vector<128x128xbf16>, vector<128x128xf32> -> vector<128x128xf32>
    %9 = arith.truncf %8 : vector<128x128xf32> to vector<128x128xbf16>
    %c0_3 = arith.constant 0 : index
    %c0_4 = arith.constant 0 : index
    %10 = vector.load %arg7[%c0_3, %c0_4] : memref<128x128xf32, #tpu.memory_space<vmem>>, vector<128x128xf32>
    %c0_5 = arith.constant 0 : index
    %c0_6 = arith.constant 0 : index
    %11 = vector.load %arg2[%c0_5, %c0_6] : memref<128x128xbf16, #tpu.memory_space<vmem>>, vector<128x128xbf16>
    %cst_7 = arith.constant dense<0.000000e+00> : vector<128x128xf32>
    %12 = tpu.matmul %11, %9, %cst_7 {dimension_numbers = #tpu.dot_dimension_numbers<[1], [0], [0], [1], [0, 0, 1, 1], [], []>} : vector<128x128xbf16>, vector<128x128xbf16>, vector<128x128xf32> -> vector<128x128xf32>
    %13 = arith.addf %10, %12 : vector<128x128xf32>
    %c0_8 = arith.constant 0 : index
    %c0_9 = arith.constant 0 : index
    %14 = vector.load %arg7[%c0_8, %c0_9] : memref<128x128xf32, #tpu.memory_space<vmem>>, vector<128x128xf32>
    tpu.vector_store %arg7[%c0_8, %c0_9], %13 {strides = array<i32>} : memref<128x128xf32, #tpu.memory_space<vmem>>, vector<128x128xf32>,
    %c0_i32_10 = arith.constant 0 : i32
    %15 = arith.cmpi eq, %arg1, %c0_i32_10 : i32
    %16 = arith.extui %15 : i1 to i32
    %c0_i32_11 = arith.constant 0 : i32
    %17 = arith.cmpi ne, %16, %c0_i32_11 : i32
    scf.if %17 {
      %c0_12 = arith.constant 0 : index
      %c0_13 = arith.constant 0 : index
      %18 = vector.load %arg7[%c0_12, %c0_13] : memref<128x128xf32, #tpu.memory_space<vmem>>, vector<128x128xf32>
      %c0_14 = arith.constant 0 : index
      %c0_15 = arith.constant 0 : index
      %19 = vector.load %arg5[%c0_14, %c0_15] : memref<1x128xf32, #tpu.memory_space<vmem>>, vector<1x128xf32>
      %20 = vector.broadcast %19 : vector<1x128xf32> to vector<128x128xf32>
      %21 = arith.addf %18, %20 : vector<128x128xf32>
      %cst_16 = arith.constant 0.000000e+00 : f32
      %22 = vector.broadcast %cst_16 : f32 to vector<128x128xf32>
      %23 = arith.maximumf %21, %22 : vector<128x128xf32>
      %24 = arith.truncf %23 : vector<128x128xf32> to vector<128x128xbf16>
      %c0_17 = arith.constant 0 : index
      %c0_18 = arith.constant 0 : index
      %25 = vector.load %arg6[%c0_17, %c0_18] : memref<128x128xbf16, #tpu.memory_space<vmem>>, vector<128x128xbf16>
      tpu.vector_store %arg6[%c0_17, %c0_18], %24 {strides = array<i32>} : memref<128x128xbf16, #tpu.memory_space<vmem>>, vector<128x128xbf16>,
    } else {
    }
    return
  }
  func.func @transform_0(%arg0: i32, %arg1: i32) -> (i32, i32) {
    %c0_i32 = arith.constant 0 : i32
    return %arg0, %arg1 : i32, i32
  }
  func.func @transform_1(%arg0: i32, %arg1: i32) -> (i32, i32) {
    %c0_i32 = arith.constant 0 : i32
    %c0_i32_0 = arith.constant 0 : i32
    %c0_i32_1 = arith.constant 0 : i32
    return %c0_i32, %c0_i32_0 : i32, i32
  }
  func.func @transform_2(%arg0: i32, %arg1: i32) -> (i32, i32) {
    %c0_i32 = arith.constant 0 : i32
    %c0_i32_0 = arith.constant 0 : i32
    %c0_i32_1 = arith.constant 0 : i32
    return %c0_i32, %c0_i32_0 : i32, i32
  }
  func.func @transform_3(%arg0: i32, %arg1: i32) -> (i32, i32) {
    %c0_i32 = arith.constant 0 : i32
    %c0_i32_0 = arith.constant 0 : i32
    %c0_i32_1 = arith.constant 0 : i32
    return %c0_i32, %c0_i32_0 : i32, i32
  }
  func.func @transform_4(%arg0: i32, %arg1: i32) -> (i32, i32) {
    %c0_i32 = arith.constant 0 : i32
    %c0_i32_0 = arith.constant 0 : i32
    return %arg0, %c0_i32 : i32, i32
  }
}

</mosaic_0001>

<llo_original>
// kernel: gcn_forward.5
$region0: #{gcn_forward.5}
  #allocation0 [shape = 'u32[]', space=smem, size = 0x4, offset = 0x4, fixed_abs, tag = 'smem constant byte address 0x4 - core index']
  #allocation1 [shape = 'u32[144,128]{1,0:T(1,128)}', space=vmem, size = 0x12000, scoped, tag = 'internal scratch']
  #allocation2 [shape = 'f32[128,128]{1,0:T(8,128)}', space=vmem, size = 0x10000, scoped, tag = 'scratch operand']
  %s0 = inlined_call_operand.vmem [shape: bf16[128,128], index: 0, kind: input, shape index: {}]
  %s1 = inlined_call_operand.vmem [shape: bf16[128,128], index: 1, kind: input, shape index: {}]
  %s2 = inlined_call_operand.vmem [shape: bf16[128,128], index: 2, kind: input, shape index: {}]
  %s3 = inlined_call_operand.vmem [shape: f32[1,128], index: 3, kind: input, shape index: {}]
  %s4 = inlined_call_operand.vmem [shape: f32[128,128], index: 4, kind: output, shape index: {}]
  %s5 = sld [smem:[#allocation0]]
  $region34: #{gcn_forward.5} parent=0
    _
  %s7 = ssub.s32 1, %s5
  %s8 = scalar_select 0, %s7, %s5
  // Predicated region
  $region2: #{gcn_forward.5} parent=0 // pred_check
    _
  $region3: #{gcn_forward.5} parent=0 // pred_check_branch
    %10 = sbr.rel (0) target = $region5
  $region4: #{gcn_forward.5} parent=0 // pred_region
    _
  $region5: #{gcn_forward.5} parent=0 // pred_fallthru
    _
  // Predicated region
  $region6: #{gcn_forward.5} parent=0 // pred_check
    _
  $region7: #{gcn_forward.5} parent=0 // pred_check_branch
    %12 = sbr.rel (0) target = $region9
  $region8: #{gcn_forward.5} parent=0 // pred_region
    _
  $region9: #{gcn_forward.5} parent=0 // pred_fallthru
    _
  // Predicated region
  $region10: #{gcn_forward.5} parent=0 // pred_check
    _
  $region11: #{gcn_forward.5} parent=0 // pred_check_branch
    %14 = sbr.rel (0) target = $region13
  $region12: #{gcn_forward.5} parent=0 // pred_region
    _
  $region13: #{gcn_forward.5} parent=0 // pred_fallthru
    _
  // Predicated region
  $region14: #{gcn_forward.5} parent=0 // pred_check
    _
  $region15: #{gcn_forward.5} parent=0 // pred_check_branch
    %16 = sbr.rel (0) target = $region17
  $region16: #{gcn_forward.5} parent=0 // pred_region
    _
  $region17: #{gcn_forward.5} parent=0 // pred_fallthru
    _
  %p18 = scmp.eq.s32.totalorder 0, 0
  // Predicated region
  $region18: #{gcn_forward.5} parent=0 // pred_check
    %p19 = pneg %p18
  $region19: #{gcn_forward.5} parent=0 // pred_check_branch
    %21 = sbr.rel (%p19) target = $region21
  $region20: #{gcn_forward.5} parent=0 // pred_region
    %22 = vst [vmem:[#allocation2] sm:$0xff] 0.0
    %23 = vst [vmem:[#allocation2 + $0x8] sm:$0xff] 0.0
    %24 = vst [vmem:[#allocation2 + $0x10] sm:$0xff] 0.0
    %25 = vst [vmem:[#allocation2 + $0x18] sm:$0xff] 0.0
    %26 = vst [vmem:[#allocation2 + $0x20] sm:$0xff] 0.0
    %27 = vst [vmem:[#allocation2 + $0x28] sm:$0xff] 0.0
    %28 = vst [vmem:[#allocation2 + $0x30] sm:$0xff] 0.0
    %29 = vst [vmem:[#allocation2 + $0x38] sm:$0xff] 0.0
    %30 = vst [vmem:[#allocation2 + $0x40] sm:$0xff] 0.0
    %31 = vst [vmem:[#allocation2 + $0x48] sm:$0xff] 0.0
    %32 = vst [vmem:[#allocation2 + $0x50] sm:$0xff] 0.0
    %33 = vst [vmem:[#allocation2 + $0x58] sm:$0xff] 0.0
    %34 = vst [vmem:[#allocation2 + $0x60] sm:$0xff] 0.0
    %35 = vst [vmem:[#allocation2 + $0x68] sm:$0xff] 0.0
    %36 = vst [vmem:[#allocation2 + $0x70] sm:$0xff] 0.0
    %37 = vst [vmem:[#allocation2 + $0x78] sm:$0xff] 0.0
  $region21: #{gcn_forward.5} parent=0 // pred_fallthru
    _
  %s38 = smul.u32 0, 128
  %s39 = sshra.s32 %s38, 3
  %s40 = sand.u32 %s38, 7
  %s41 = smul.addr %s39, 4
  %s42 = scalar_lea.vmem %s1, %s41
  %v43 = vld [vmem:[%s42] sm:$0xf]
  %v44 = vld [vmem:[%s42 + $0x4] sm:$0xf]
  %v45 = vld [vmem:[%s42 + $0x8] sm:$0xf]
  %v46 = vld [vmem:[%s42 + $0xc] sm:$0xf]
  %v47 = vld [vmem:[%s42 + $0x10] sm:$0xf]
  %v48 = vld [vmem:[%s42 + $0x14] sm:$0xf]
  %v49 = vld [vmem:[%s42 + $0x18] sm:$0xf]
  %v50 = vld [vmem:[%s42 + $0x1c] sm:$0xf]
  %v51 = vld [vmem:[%s42 + $0x20] sm:$0xf]
  %v52 = vld [vmem:[%s42 + $0x24] sm:$0xf]
  %v53 = vld [vmem:[%s42 + $0x28] sm:$0xf]
  %v54 = vld [vmem:[%s42 + $0x2c] sm:$0xf]
  %v55 = vld [vmem:[%s42 + $0x30] sm:$0xf]
  %v56 = vld [vmem:[%s42 + $0x34] sm:$0xf]
  %v57 = vld [vmem:[%s42 + $0x38] sm:$0xf]
  %v58 = vld [vmem:[%s42 + $0x3c] sm:$0xf]
  %v59 = vld [vmem:[%s2] sm:$0xf]
  %v60 = vld [vmem:[%s2 + $0x4] sm:$0xf]
  %v61 = vld [vmem:[%s2 + $0x8] sm:$0xf]
  %v62 = vld [vmem:[%s2 + $0xc] sm:$0xf]
  %v63 = vld [vmem:[%s2 + $0x10] sm:$0xf]
  %v64 = vld [vmem:[%s2 + $0x14] sm:$0xf]
  %v65 = vld [vmem:[%s2 + $0x18] sm:$0xf]
  %v66 = vld [vmem:[%s2 + $0x1c] sm:$0xf]
  %v67 = vld [vmem:[%s2 + $0x20] sm:$0xf]
  %v68 = vld [vmem:[%s2 + $0x24] sm:$0xf]
  %v69 = vld [vmem:[%s2 + $0x28] sm:$0xf]
  %v70 = vld [vmem:[%s2 + $0x2c] sm:$0xf]
  %v71 = vld [vmem:[%s2 + $0x30] sm:$0xf]
  %v72 = vld [vmem:[%s2 + $0x34] sm:$0xf]
  %v73 = vld [vmem:[%s2 + $0x38] sm:$0xf]
  %v74 = vld [vmem:[%s2 + $0x3c] sm:$0xf]
  %v91 = vunpack.c.l.b16 %v43
  %v92 = vunpack.c.l.b16 %v44
  %v93 = vunpack.c.l.b16 %v45
  %v94 = vunpack.c.l.b16 %v46
  %v95 = vunpack.c.l.b16 %v47
  %v96 = vunpack.c.l.b16 %v48
  %v97 = vunpack.c.l.b16 %v49
  %v98 = vunpack.c.l.b16 %v50
  %v99 = vunpack.c.l.b16 %v51
  %v100 = vunpack.c.l.b16 %v52
  %v101 = vunpack.c.l.b16 %v53
  %v102 = vunpack.c.l.b16 %v54
  %v103 = vunpack.c.l.b16 %v55
  %v104 = vunpack.c.l.b16 %v56
  %v105 = vunpack.c.l.b16 %v57
  %v106 = vunpack.c.l.b16 %v58
  %v107 = vpack.c.b16 %v92, %v91
  %v108 = vpack.c.b16 %v94, %v93
  %v109 = vpack.c.b16 %v96, %v95
  %v110 = vpack.c.b16 %v98, %v97
  %v111 = vpack.c.b16 %v100, %v99
  %v112 = vpack.c.b16 %v102, %v101
  %v113 = vpack.c.b16 %v104, %v103
  %v114 = vpack.c.b16 %v106, %v105
  %v139 = vunpack.c.l.b16 %v59
  %v140 = vunpack.c.l.b16 %v60
  %v141 = vunpack.c.l.b16 %v61
  %v142 = vunpack.c.l.b16 %v62
  %v143 = vunpack.c.l.b16 %v63
  %v144 = vunpack.c.l.b16 %v64
  %v145 = vunpack.c.l.b16 %v65
  %v146 = vunpack.c.l.b16 %v66
  %v147 = vunpack.c.l.b16 %v67
  %v148 = vunpack.c.l.b16 %v68
  %v149 = vunpack.c.l.b16 %v69
  %v150 = vunpack.c.l.b16 %v70
  %v151 = vunpack.c.l.b16 %v71
  %v152 = vunpack.c.l.b16 %v72
  %v153 = vunpack.c.l.b16 %v73
  %v154 = vunpack.c.l.b16 %v74
  %v155 = vpack.c.b16 %v140, %v139
  %v156 = vpack.c.b16 %v142, %v141
  %v157 = vpack.c.b16 %v144, %v143
  %v158 = vpack.c.b16 %v146, %v145
  %v159 = vpack.c.b16 %v148, %v147
  %v160 = vpack.c.b16 %v150, %v149
  %v161 = vpack.c.b16 %v152, %v151
  %v162 = vpack.c.b16 %v154, %v153
  %171 = vmatprep.subr.bf16.mxu0 0
  %172 = vmatpush1.bf16.msra.mxu0 %v155
  %173 = vmatprep.subr.bf16.mxu0 0
  %174 = vmatpush1.bf16.msra.mxu0 %v156
  %175 = vmatprep.subr.bf16.mxu0 0
  %176 = vmatpush1.bf16.msra.mxu0 %v157
  %177 = vmatprep.subr.bf16.mxu0 0
  %178 = vmatpush1.bf16.msra.mxu0 %v158
  %179 = vmatprep.subr.bf16.mxu0 0
  %180 = vmatpush1.bf16.msra.mxu0 %v159
  %181 = vmatprep.subr.bf16.mxu0 0
  %182 = vmatpush1.bf16.msra.mxu0 %v160
  %183 = vmatprep.subr.bf16.mxu0 0
  %184 = vmatpush1.bf16.msra.mxu0 %v161
  %185 = vmatprep.subr.bf16.mxu0 0
  %186 = vmatpush1.bf16.msra.mxu0 %v162
  %187 = vmatprep.subr.bf16.mxu0 0
  %188 = vmatpush1.bf16.msra.mxu0 0
  %189 = vmatprep.subr.bf16.mxu0 0
  %190 = vmatpush1.bf16.msra.mxu0 0
  %191 = vmatprep.subr.bf16.mxu0 0
  %192 = vmatpush1.bf16.msra.mxu0 0
  %193 = vmatprep.subr.bf16.mxu0 0
  %194 = vmatpush1.bf16.msra.mxu0 0
  %195 = vmatprep.subr.bf16.mxu0 0
  %196 = vmatpush1.bf16.msra.mxu0 0
  %197 = vmatprep.subr.bf16.mxu0 0
  %198 = vmatpush1.bf16.msra.mxu0 0
  %199 = vmatprep.subr.bf16.mxu0 0
  %200 = vmatpush1.bf16.msra.mxu0 0
  %201 = vmatprep.subr.bf16.mxu0 0
  %202 = vmatpush1.bf16.msra.mxu0 0
  %203 = vmatprep.mubr.bf16.mxu0 0
  %204 = vmatmul.mubr.bf16.gmra.mrb[0].mxu0 %v107
  %v205 = vpop.f32.mrb[0].mxu0
  %v206 = vadd.f32 0.0, %v205
  %v207 = vpop.f32.mrb[0].mxu0
  %v208 = vpop.f32.mrb[0].mxu0
  %v209 = vadd.f32 0.0, %v208
  %v210 = vpop.f32.mrb[0].mxu0
  %211 = vmatprep.mubr.bf16.mxu0 0
  %212 = vmatmul.mubr.bf16.gmra.mrb[0].mxu0 %v108
  %v213 = vpop.f32.mrb[0].mxu0
  %v214 = vadd.f32 0.0, %v213
  %v215 = vpop.f32.mrb[0].mxu0
  %v216 = vpop.f32.mrb[0].mxu0
  %v217 = vadd.f32 0.0, %v216
  %v218 = vpop.f32.mrb[0].mxu0
  %219 = vmatprep.mubr.bf16.mxu0 0
  %220 = vmatmul.mubr.bf16.gmra.mrb[0].mxu0 %v109
  %v221 = vpop.f32.mrb[0].mxu0
  %v222 = vadd.f32 0.0, %v221
  %v223 = vpop.f32.mrb[0].mxu0
  %v224 = vpop.f32.mrb[0].mxu0
  %v225 = vadd.f32 0.0, %v224
  %v226 = vpop.f32.mrb[0].mxu0
  %227 = vmatprep.mubr.bf16.mxu0 0
  %228 = vmatmul.mubr.bf16.gmra.mrb[0].mxu0 %v110
  %v229 = vpop.f32.mrb[0].mxu0
  %v230 = vadd.f32 0.0, %v229
  %v231 = vpop.f32.mrb[0].mxu0
  %v232 = vpop.f32.mrb[0].mxu0
  %v233 = vadd.f32 0.0, %v232
  %v234 = vpop.f32.mrb[0].mxu0
  %235 = vmatprep.mubr.bf16.mxu0 0
  %236 = vmatmul.mubr.bf16.gmra.mrb[0].mxu0 %v111
  %v237 = vpop.f32.mrb[0].mxu0
  %v238 = vadd.f32 0.0, %v237
  %v239 = vpop.f32.mrb[0].mxu0
  %v240 = vpop.f32.mrb[0].mxu0
  %v241 = vadd.f32 0.0, %v240
  %v242 = vpop.f32.mrb[0].mxu0
  %243 = vmatprep.mubr.bf16.mxu0 0
  %244 = vmatmul.mubr.bf16.gmra.mrb[0].mxu0 %v112
  %v245 = vpop.f32.mrb[0].mxu0
  %v246 = vadd.f32 0.0, %v245
  %v247 = vpop.f32.mrb[0].mxu0
  %v248 = vpop.f32.mrb[0].mxu0
  %v249 = vadd.f32 0.0, %v248
  %v250 = vpop.f32.mrb[0].mxu0
  %251 = vmatprep.mubr.bf16.mxu0 0
  %252 = vmatmul.mubr.bf16.gmra.mrb[0].mxu0 %v113
  %v253 = vpop.f32.mrb[0].mxu0
  %v254 = vadd.f32 0.0, %v253
  %v255 = vpop.f32.mrb[0].mxu0
  %v256 = vpop.f32.mrb[0].mxu0
  %v257 = vadd.f32 0.0, %v256
  %v258 = vpop.f32.mrb[0].mxu0
  %259 = vmatprep.mubr.bf16.mxu0 0
  %260 = vmatmul.mubr.bf16.gmra.mrb[0].mxu0 %v114
  %v261 = vpop.f32.mrb[0].mxu0
  %v262 = vadd.f32 0.0, %v261
  %v263 = vpop.f32.mrb[0].mxu0
  %v264 = vpop.f32.mrb[0].mxu0
  %v265 = vadd.f32 0.0, %v264
  %v266 = vpop.f32.mrb[0].mxu0
  %267 = vdwg.mxu0
  %v268 = vpack.c.bf16 %v209, %v206
  %v269 = vpack.c.bf16 %v217, %v214
  %v270 = vpack.c.bf16 %v225, %v222
  %v271 = vpack.c.bf16 %v233, %v230
  %v272 = vpack.c.bf16 %v241, %v238
  %v273 = vpack.c.bf16 %v249, %v246
  %v274 = vpack.c.bf16 %v257, %v254
  %v275 = vpack.c.bf16 %v265, %v262
  %v276 = vld [vmem:[#allocation2] sm:$0xff]
  %v277 = vld [vmem:[#allocation2 + $0x8] sm:$0xff]
  %v278 = vld [vmem:[#allocation2 + $0x10] sm:$0xff]
  %v279 = vld [vmem:[#allocation2 + $0x18] sm:$0xff]
  %v280 = vld [vmem:[#allocation2 + $0x20] sm:$0xff]
  %v281 = vld [vmem:[#allocation2 + $0x28] sm:$0xff]
  %v282 = vld [vmem:[#allocation2 + $0x30] sm:$0xff]
  %v283 = vld [vmem:[#allocation2 + $0x38] sm:$0xff]
  %v284 = vld [vmem:[#allocation2 + $0x40] sm:$0xff]
  %v285 = vld [vmem:[#allocation2 + $0x48] sm:$0xff]
  %v286 = vld [vmem:[#allocation2 + $0x50] sm:$0xff]
  %v287 = vld [vmem:[#allocation2 + $0x58] sm:$0xff]
  %v288 = vld [vmem:[#allocation2 + $0x60] sm:$0xff]
  %v289 = vld [vmem:[#allocation2 + $0x68] sm:$0xff]
  %v290 = vld [vmem:[#allocation2 + $0x70] sm:$0xff]
  %v291 = vld [vmem:[#allocation2 + $0x78] sm:$0xff]
  %v292 = vld [vmem:[%s0] sm:$0xf]
  %v293 = vld [vmem:[%s0 + $0x4] sm:$0xf]
  %v294 = vld [vmem:[%s0 + $0x8] sm:$0xf]
  %v295 = vld [vmem:[%s0 + $0xc] sm:$0xf]
  %v296 = vld [vmem:[%s0 + $0x10] sm:$0xf]
  %v297 = vld [vmem:[%s0 + $0x14] sm:$0xf]
  %v298 = vld [vmem:[%s0 + $0x18] sm:$0xf]
  %v299 = vld [vmem:[%s0 + $0x1c] sm:$0xf]
  %v300 = vld [vmem:[%s0 + $0x20] sm:$0xf]
  %v301 = vld [vmem:[%s0 + $0x24] sm:$0xf]
  %v302 = vld [vmem:[%s0 + $0x28] sm:$0xf]
  %v303 = vld [vmem:[%s0 + $0x2c] sm:$0xf]
  %v304 = vld [vmem:[%s0 + $0x30] sm:$0xf]
  %v305 = vld [vmem:[%s0 + $0x34] sm:$0xf]
  %v306 = vld [vmem:[%s0 + $0x38] sm:$0xf]
  %v307 = vld [vmem:[%s0 + $0x3c] sm:$0xf]
  %v324 = vunpack.c.l.b16 %v292
  %v325 = vunpack.c.l.b16 %v293
  %v326 = vunpack.c.l.b16 %v294
  %v327 = vunpack.c.l.b16 %v295
  %v328 = vunpack.c.l.b16 %v296
  %v329 = vunpack.c.l.b16 %v297
  %v330 = vunpack.c.l.b16 %v298
  %v331 = vunpack.c.l.b16 %v299
  %v332 = vunpack.c.l.b16 %v300
  %v333 = vunpack.c.l.b16 %v301
  %v334 = vunpack.c.l.b16 %v302
  %v335 = vunpack.c.l.b16 %v303
  %v336 = vunpack.c.l.b16 %v304
  %v337 = vunpack.c.l.b16 %v305
  %v338 = vunpack.c.l.b16 %v306
  %v339 = vunpack.c.l.b16 %v307
  %v340 = vpack.c.b16 %v325, %v324
  %v341 = vpack.c.b16 %v327, %v326
  %v342 = vpack.c.b16 %v329, %v328
  %v343 = vpack.c.b16 %v331, %v330
  %v344 = vpack.c.b16 %v333, %v332
  %v345 = vpack.c.b16 %v335, %v334
  %v346 = vpack.c.b16 %v337, %v336
  %v347 = vpack.c.b16 %v339, %v338
  %356 = vmatprep.subr.bf16.mxu0 0
  %357 = vmatpush1.bf16.msra.mxu0 %v268
  %358 = vmatprep.subr.bf16.mxu0 0
  %359 = vmatpush1.bf16.msra.mxu0 %v269
  %360 = vmatprep.subr.bf16.mxu0 0
  %361 = vmatpush1.bf16.msra.mxu0 %v270
  %362 = vmatprep.subr.bf16.mxu0 0
  %363 = vmatpush1.bf16.msra.mxu0 %v271
  %364 = vmatprep.subr.bf16.mxu0 0
  %365 = vmatpush1.bf16.msra.mxu0 %v272
  %366 = vmatprep.subr.bf16.mxu0 0
  %367 = vmatpush1.bf16.msra.mxu0 %v273
  %368 = vmatprep.subr.bf16.mxu0 0
  %369 = vmatpush1.bf16.msra.mxu0 %v274
  %370 = vmatprep.subr.bf16.mxu0 0
  %371 = vmatpush1.bf16.msra.mxu0 %v275
  %372 = vmatprep.subr.bf16.mxu0 0
  %373 = vmatpush1.bf16.msra.mxu0 0
  %374 = vmatprep.subr.bf16.mxu0 0
  %375 = vmatpush1.bf16.msra.mxu0 0
  %376 = vmatprep.subr.bf16.mxu0 0
  %377 = vmatpush1.bf16.msra.mxu0 0
  %378 = vmatprep.subr.bf16.mxu0 0
  %379 = vmatpush1.bf16.msra.mxu0 0
  %380 = vmatprep.subr.bf16.mxu0 0
  %381 = vmatpush1.bf16.msra.mxu0 0
  %382 = vmatprep.subr.bf16.mxu0 0
  %383 = vmatpush1.bf16.msra.mxu0 0
  %384 = vmatprep.subr.bf16.mxu0 0
  %385 = vmatpush1.bf16.msra.mxu0 0
  %386 = vmatprep.subr.bf16.mxu0 0
  %387 = vmatpush1.bf16.msra.mxu0 0
  %388 = vmatprep.mubr.bf16.mxu0 0
  %389 = vmatmul.mubr.bf16.gmra.mrb[0].mxu0 %v340
  %v390 = vpop.f32.mrb[0].mxu0
  %v391 = vadd.f32 0.0, %v390
  %v392 = vpop.f32.mrb[0].mxu0
  %v393 = vpop.f32.mrb[0].mxu0
  %v394 = vadd.f32 0.0, %v393
  %v395 = vpop.f32.mrb[0].mxu0
  %396 = vmatprep.mubr.bf16.mxu0 0
  %397 = vmatmul.mubr.bf16.gmra.mrb[0].mxu0 %v341
  %v398 = vpop.f32.mrb[0].mxu0
  %v399 = vadd.f32 0.0, %v398
  %v400 = vpop.f32.mrb[0].mxu0
  %v401 = vpop.f32.mrb[0].mxu0
  %v402 = vadd.f32 0.0, %v401
  %v403 = vpop.f32.mrb[0].mxu0
  %404 = vmatprep.mubr.bf16.mxu0 0
  %405 = vmatmul.mubr.bf16.gmra.mrb[0].mxu0 %v342
  %v406 = vpop.f32.mrb[0].mxu0
  %v407 = vadd.f32 0.0, %v406
  %v408 = vpop.f32.mrb[0].mxu0
  %v409 = vpop.f32.mrb[0].mxu0
  %v410 = vadd.f32 0.0, %v409
  %v411 = vpop.f32.mrb[0].mxu0
  %412 = vmatprep.mubr.bf16.mxu0 0
  %413 = vmatmul.mubr.bf16.gmra.mrb[0].mxu0 %v343
  %v414 = vpop.f32.mrb[0].mxu0
  %v415 = vadd.f32 0.0, %v414
  %v416 = vpop.f32.mrb[0].mxu0
  %v417 = vpop.f32.mrb[0].mxu0
  %v418 = vadd.f32 0.0, %v417
  %v419 = vpop.f32.mrb[0].mxu0
  %420 = vmatprep.mubr.bf16.mxu0 0
  %421 = vmatmul.mubr.bf16.gmra.mrb[0].mxu0 %v344
  %v422 = vpop.f32.mrb[0].mxu0
  %v423 = vadd.f32 0.0, %v422
  %v424 = vpop.f32.mrb[0].mxu0
  %v425 = vpop.f32.mrb[0].mxu0
  %v426 = vadd.f32 0.0, %v425
  %v427 = vpop.f32.mrb[0].mxu0
  %428 = vmatprep.mubr.bf16.mxu0 0
  %429 = vmatmul.mubr.bf16.gmra.mrb[0].mxu0 %v345
  %v430 = vpop.f32.mrb[0].mxu0
  %v431 = vadd.f32 0.0, %v430
  %v432 = vpop.f32.mrb[0].mxu0
  %v433 = vpop.f32.mrb[0].mxu0
  %v434 = vadd.f32 0.0, %v433
  %v435 = vpop.f32.mrb[0].mxu0
  %436 = vmatprep.mubr.bf16.mxu0 0
  %437 = vmatmul.mubr.bf16.gmra.mrb[0].mxu0 %v346
  %v438 = vpop.f32.mrb[0].mxu0
  %v439 = vadd.f32 0.0, %v438
  %v440 = vpop.f32.mrb[0].mxu0
  %v441 = vpop.f32.mrb[0].mxu0
  %v442 = vadd.f32 0.0, %v441
  %v443 = vpop.f32.mrb[0].mxu0
  %444 = vmatprep.mubr.bf16.mxu0 0
  %445 = vmatmul.mubr.bf16.gmra.mrb[0].mxu0 %v347
  %v446 = vpop.f32.mrb[0].mxu0
  %v447 = vadd.f32 0.0, %v446
  %v448 = vpop.f32.mrb[0].mxu0
  %v449 = vpop.f32.mrb[0].mxu0
  %v450 = vadd.f32 0.0, %v449
  %v451 = vpop.f32.mrb[0].mxu0
  %452 = vdwg.mxu0
  %v453 = vadd.f32 %v276, %v391
  %v454 = vadd.f32 %v277, %v394
  %v455 = vadd.f32 %v278, %v399
  %v456 = vadd.f32 %v279, %v402
  %v457 = vadd.f32 %v280, %v407
  %v458 = vadd.f32 %v281, %v410
  %v459 = vadd.f32 %v282, %v415
  %v460 = vadd.f32 %v283, %v418
  %v461 = vadd.f32 %v284, %v423
  %v462 = vadd.f32 %v285, %v426
  %v463 = vadd.f32 %v286, %v431
  %v464 = vadd.f32 %v287, %v434
  %v465 = vadd.f32 %v288, %v439
  %v466 = vadd.f32 %v289, %v442
  %v467 = vadd.f32 %v290, %v447
  %v468 = vadd.f32 %v291, %v450
  %469 = vst [vmem:[#allocation2] sm:$0xff] %v453
  %470 = vst [vmem:[#allocation2 + $0x8] sm:$0xff] %v454
  %471 = vst [vmem:[#allocation2 + $0x10] sm:$0xff] %v455
  %472 = vst [vmem:[#allocation2 + $0x18] sm:$0xff] %v456
  %473 = vst [vmem:[#allocation2 + $0x20] sm:$0xff] %v457
  %474 = vst [vmem:[#allocation2 + $0x28] sm:$0xff] %v458
  %475 = vst [vmem:[#allocation2 + $0x30] sm:$0xff] %v459
  %476 = vst [vmem:[#allocation2 + $0x38] sm:$0xff] %v460
  %477 = vst [vmem:[#allocation2 + $0x40] sm:$0xff] %v461
  %478 = vst [vmem:[#allocation2 + $0x48] sm:$0xff] %v462
  %479 = vst [vmem:[#allocation2 + $0x50] sm:$0xff] %v463
  %480 = vst [vmem:[#allocation2 + $0x58] sm:$0xff] %v464
  %481 = vst [vmem:[#allocation2 + $0x60] sm:$0xff] %v465
  %482 = vst [vmem:[#allocation2 + $0x68] sm:$0xff] %v466
  %483 = vst [vmem:[#allocation2 + $0x70] sm:$0xff] %v467
  %484 = vst [vmem:[#allocation2 + $0x78] sm:$0xff] %v468
  // Predicated region
  $region22: #{gcn_forward.5} parent=0 // pred_check
    %p485 = pneg %p18
  $region23: #{gcn_forward.5} parent=0 // pred_check_branch
    %487 = sbr.rel (%p485) target = $region25
  $region24: #{gcn_forward.5} parent=0 // pred_region
    %v488 = vld [vmem:[#allocation2] sm:$0xff]
    %v489 = vld [vmem:[#allocation2 + $0x8] sm:$0xff]
    %v490 = vld [vmem:[#allocation2 + $0x10] sm:$0xff]
    %v491 = vld [vmem:[#allocation2 + $0x18] sm:$0xff]
    %v492 = vld [vmem:[#allocation2 + $0x20] sm:$0xff]
    %v493 = vld [vmem:[#allocation2 + $0x28] sm:$0xff]
    %v494 = vld [vmem:[#allocation2 + $0x30] sm:$0xff]
    %v495 = vld [vmem:[#allocation2 + $0x38] sm:$0xff]
    %v496 = vld [vmem:[#allocation2 + $0x40] sm:$0xff]
    %v497 = vld [vmem:[#allocation2 + $0x48] sm:$0xff]
    %v498 = vld [vmem:[#allocation2 + $0x50] sm:$0xff]
    %v499 = vld [vmem:[#allocation2 + $0x58] sm:$0xff]
    %v500 = vld [vmem:[#allocation2 + $0x60] sm:$0xff]
    %v501 = vld [vmem:[#allocation2 + $0x68] sm:$0xff]
    %v502 = vld [vmem:[#allocation2 + $0x70] sm:$0xff]
    %v503 = vld [vmem:[#allocation2 + $0x78] sm:$0xff]
    %v504 = vld [vmem:[%s3] sm:$0x1]
    %v506 = vlaneseq
    %v507 = vshrl.u32 %v506, 7
    %v508 = vsub.s32 0, %v507
    %v509 = vrot.slane %v504, %v508
    %v511 = vadd.f32 %v488, %v509
    %v512 = vadd.f32 %v489, %v509
    %v513 = vadd.f32 %v490, %v509
    %v514 = vadd.f32 %v491, %v509
    %v515 = vadd.f32 %v492, %v509
    %v516 = vadd.f32 %v493, %v509
    %v517 = vadd.f32 %v494, %v509
    %v518 = vadd.f32 %v495, %v509
    %v519 = vadd.f32 %v496, %v509
    %v520 = vadd.f32 %v497, %v509
    %v521 = vadd.f32 %v498, %v509
    %v522 = vadd.f32 %v499, %v509
    %v523 = vadd.f32 %v500, %v509
    %v524 = vadd.f32 %v501, %v509
    %v525 = vadd.f32 %v502, %v509
    %v526 = vadd.f32 %v503, %v509
    %527 = vst [vmem:[%s4] sm:$0xff] %v511
    %528 = vst [vmem:[%s4 + $0x8] sm:$0xff] %v512
    %529 = vst [vmem:[%s4 + $0x10] sm:$0xff] %v513
    %530 = vst [vmem:[%s4 + $0x18] sm:$0xff] %v514
    %531 = vst [vmem:[%s4 + $0x20] sm:$0xff] %v515
    %532 = vst [vmem:[%s4 + $0x28] sm:$0xff] %v516
    %533 = vst [vmem:[%s4 + $0x30] sm:$0xff] %v517
    %534 = vst [vmem:[%s4 + $0x38] sm:$0xff] %v518
    %535 = vst [vmem:[%s4 + $0x40] sm:$0xff] %v519
    %536 = vst [vmem:[%s4 + $0x48] sm:$0xff] %v520
    %537 = vst [vmem:[%s4 + $0x50] sm:$0xff] %v521
    %538 = vst [vmem:[%s4 + $0x58] sm:$0xff] %v522
    %539 = vst [vmem:[%s4 + $0x60] sm:$0xff] %v523
    %540 = vst [vmem:[%s4 + $0x68] sm:$0xff] %v524
    %541 = vst [vmem:[%s4 + $0x70] sm:$0xff] %v525
    %542 = vst [vmem:[%s4 + $0x78] sm:$0xff] %v526
  $region25: #{gcn_forward.5} parent=0 // pred_fallthru
    _
  // Predicated region
  $region26: #{gcn_forward.5} parent=0 // pred_check
    _
  $region27: #{gcn_forward.5} parent=0 // pred_check_branch
    %544 = sbr.rel (0) target = $region29
  $region28: #{gcn_forward.5} parent=0 // pred_region
    _
  $region29: #{gcn_forward.5} parent=0 // pred_fallthru
    _
  // Predicated region
  $region30: #{gcn_forward.5} parent=0 // pred_check
    _
  $region31: #{gcn_forward.5} parent=0 // pred_check_branch
    %546 = sbr.rel (0) target = $region33
  $region32: #{gcn_forward.5} parent=0 // pred_region
    _
  $region33: #{gcn_forward.5} parent=0 // pred_fallthru
    _

// kernel: gcn_forward.3
$region0: #{gcn_forward.3}
  #allocation0 [shape = 'u32[]', space=smem, size = 0x4, offset = 0x4, fixed_abs, tag = 'smem constant byte address 0x4 - core index']
  #allocation1 [shape = 'u32[144,128]{1,0:T(1,128)}', space=vmem, size = 0x12000, scoped, tag = 'internal scratch']
  #allocation2 [shape = 'f32[128,128]{1,0:T(8,128)}', space=vmem, size = 0x10000, scoped, tag = 'scratch operand']
  %s0 = inlined_call_operand.vmem [shape: bf16[128,128], index: 0, kind: input, shape index: {}]
  %s1 = inlined_call_operand.vmem [shape: bf16[128,128], index: 1, kind: input, shape index: {}]
  %s2 = inlined_call_operand.vmem [shape: bf16[128,128], index: 2, kind: input, shape index: {}]
  %s3 = inlined_call_operand.vmem [shape: f32[1,128], index: 3, kind: input, shape index: {}]
  %s4 = inlined_call_operand.vmem [shape: bf16[128,128], index: 4, kind: output, shape index: {}]
  %s5 = sld [smem:[#allocation0]]
  $region34: #{gcn_forward.3} parent=0
    _
  %s7 = ssub.s32 1, %s5
  %s8 = scalar_select 0, %s7, %s5
  // Predicated region
  $region2: #{gcn_forward.3} parent=0 // pred_check
    _
  $region3: #{gcn_forward.3} parent=0 // pred_check_branch
    %10 = sbr.rel (0) target = $region5
  $region4: #{gcn_forward.3} parent=0 // pred_region
    _
  $region5: #{gcn_forward.3} parent=0 // pred_fallthru
    _
  // Predicated region
  $region6: #{gcn_forward.3} parent=0 // pred_check
    _
  $region7: #{gcn_forward.3} parent=0 // pred_check_branch
    %12 = sbr.rel (0) target = $region9
  $region8: #{gcn_forward.3} parent=0 // pred_region
    _
  $region9: #{gcn_forward.3} parent=0 // pred_fallthru
    _
  // Predicated region
  $region10: #{gcn_forward.3} parent=0 // pred_check
    _
  $region11: #{gcn_forward.3} parent=0 // pred_check_branch
    %14 = sbr.rel (0) target = $region13
  $region12: #{gcn_forward.3} parent=0 // pred_region
    _
  $region13: #{gcn_forward.3} parent=0 // pred_fallthru
    _
  // Predicated region
  $region14: #{gcn_forward.3} parent=0 // pred_check
    _
  $region15: #{gcn_forward.3} parent=0 // pred_check_branch
    %16 = sbr.rel (0) target = $region17
  $region16: #{gcn_forward.3} parent=0 // pred_region
    _
  $region17: #{gcn_forward.3} parent=0 // pred_fallthru
    _
  %p18 = scmp.eq.s32.totalorder 0, 0
  // Predicated region
  $region18: #{gcn_forward.3} parent=0 // pred_check
    %p19 = pneg %p18
  $region19: #{gcn_forward.3} parent=0 // pred_check_branch
    %21 = sbr.rel (%p19) target = $region21
  $region20: #{gcn_forward.3} parent=0 // pred_region
    %22 = vst [vmem:[#allocation2] sm:$0xff] 0.0
    %23 = vst [vmem:[#allocation2 + $0x8] sm:$0xff] 0.0
    %24 = vst [vmem:[#allocation2 + $0x10] sm:$0xff] 0.0
    %25 = vst [vmem:[#allocation2 + $0x18] sm:$0xff] 0.0
    %26 = vst [vmem:[#allocation2 + $0x20] sm:$0xff] 0.0
    %27 = vst [vmem:[#allocation2 + $0x28] sm:$0xff] 0.0
    %28 = vst [vmem:[#allocation2 + $0x30] sm:$0xff] 0.0
    %29 = vst [vmem:[#allocation2 + $0x38] sm:$0xff] 0.0
    %30 = vst [vmem:[#allocation2 + $0x40] sm:$0xff] 0.0
    %31 = vst [vmem:[#allocation2 + $0x48] sm:$0xff] 0.0
    %32 = vst [vmem:[#allocation2 + $0x50] sm:$0xff] 0.0
    %33 = vst [vmem:[#allocation2 + $0x58] sm:$0xff] 0.0
    %34 = vst [vmem:[#allocation2 + $0x60] sm:$0xff] 0.0
    %35 = vst [vmem:[#allocation2 + $0x68] sm:$0xff] 0.0
    %36 = vst [vmem:[#allocation2 + $0x70] sm:$0xff] 0.0
    %37 = vst [vmem:[#allocation2 + $0x78] sm:$0xff] 0.0
  $region21: #{gcn_forward.3} parent=0 // pred_fallthru
    _
  %s38 = smul.u32 0, 128
  %s39 = sshra.s32 %s38, 3
  %s40 = sand.u32 %s38, 7
  %s41 = smul.addr %s39, 4
  %s42 = scalar_lea.vmem %s1, %s41
  %v43 = vld [vmem:[%s42] sm:$0xf]
  %v44 = vld [vmem:[%s42 + $0x4] sm:$0xf]
  %v45 = vld [vmem:[%s42 + $0x8] sm:$0xf]
  %v46 = vld [vmem:[%s42 + $0xc] sm:$0xf]
  %v47 = vld [vmem:[%s42 + $0x10] sm:$0xf]
  %v48 = vld [vmem:[%s42 + $0x14] sm:$0xf]
  %v49 = vld [vmem:[%s42 + $0x18] sm:$0xf]
  %v50 = vld [vmem:[%s42 + $0x1c] sm:$0xf]
  %v51 = vld [vmem:[%s42 + $0x20] sm:$0xf]
  %v52 = vld [vmem:[%s42 + $0x24] sm:$0xf]
  %v53 = vld [vmem:[%s42 + $0x28] sm:$0xf]
  %v54 = vld [vmem:[%s42 + $0x2c] sm:$0xf]
  %v55 = vld [vmem:[%s42 + $0x30] sm:$0xf]
  %v56 = vld [vmem:[%s42 + $0x34] sm:$0xf]
  %v57 = vld [vmem:[%s42 + $0x38] sm:$0xf]
  %v58 = vld [vmem:[%s42 + $0x3c] sm:$0xf]
  %v59 = vld [vmem:[%s2] sm:$0xf]
  %v60 = vld [vmem:[%s2 + $0x4] sm:$0xf]
  %v61 = vld [vmem:[%s2 + $0x8] sm:$0xf]
  %v62 = vld [vmem:[%s2 + $0xc] sm:$0xf]
  %v63 = vld [vmem:[%s2 + $0x10] sm:$0xf]
  %v64 = vld [vmem:[%s2 + $0x14] sm:$0xf]
  %v65 = vld [vmem:[%s2 + $0x18] sm:$0xf]
  %v66 = vld [vmem:[%s2 + $0x1c] sm:$0xf]
  %v67 = vld [vmem:[%s2 + $0x20] sm:$0xf]
  %v68 = vld [vmem:[%s2 + $0x24] sm:$0xf]
  %v69 = vld [vmem:[%s2 + $0x28] sm:$0xf]
  %v70 = vld [vmem:[%s2 + $0x2c] sm:$0xf]
  %v71 = vld [vmem:[%s2 + $0x30] sm:$0xf]
  %v72 = vld [vmem:[%s2 + $0x34] sm:$0xf]
  %v73 = vld [vmem:[%s2 + $0x38] sm:$0xf]
  %v74 = vld [vmem:[%s2 + $0x3c] sm:$0xf]
  %v91 = vunpack.c.l.b16 %v43
  %v92 = vunpack.c.l.b16 %v44
  %v93 = vunpack.c.l.b16 %v45
  %v94 = vunpack.c.l.b16 %v46
  %v95 = vunpack.c.l.b16 %v47
  %v96 = vunpack.c.l.b16 %v48
  %v97 = vunpack.c.l.b16 %v49
  %v98 = vunpack.c.l.b16 %v50
  %v99 = vunpack.c.l.b16 %v51
  %v100 = vunpack.c.l.b16 %v52
  %v101 = vunpack.c.l.b16 %v53
  %v102 = vunpack.c.l.b16 %v54
  %v103 = vunpack.c.l.b16 %v55
  %v104 = vunpack.c.l.b16 %v56
  %v105 = vunpack.c.l.b16 %v57
  %v106 = vunpack.c.l.b16 %v58
  %v107 = vpack.c.b16 %v92, %v91
  %v108 = vpack.c.b16 %v94, %v93
  %v109 = vpack.c.b16 %v96, %v95
  %v110 = vpack.c.b16 %v98, %v97
  %v111 = vpack.c.b16 %v100, %v99
  %v112 = vpack.c.b16 %v102, %v101
  %v113 = vpack.c.b16 %v104, %v103
  %v114 = vpack.c.b16 %v106, %v105
  %v139 = vunpack.c.l.b16 %v59
  %v140 = vunpack.c.l.b16 %v60
  %v141 = vunpack.c.l.b16 %v61
  %v142 = vunpack.c.l.b16 %v62
  %v143 = vunpack.c.l.b16 %v63
  %v144 = vunpack.c.l.b16 %v64
  %v145 = vunpack.c.l.b16 %v65
  %v146 = vunpack.c.l.b16 %v66
  %v147 = vunpack.c.l.b16 %v67
  %v148 = vunpack.c.l.b16 %v68
  %v149 = vunpack.c.l.b16 %v69
  %v150 = vunpack.c.l.b16 %v70
  %v151 = vunpack.c.l.b16 %v71
  %v152 = vunpack.c.l.b16 %v72
  %v153 = vunpack.c.l.b16 %v73
  %v154 = vunpack.c.l.b16 %v74
  %v155 = vpack.c.b16 %v140, %v139
  %v156 = vpack.c.b16 %v142, %v141
  %v157 = vpack.c.b16 %v144, %v143
  %v158 = vpack.c.b16 %v146, %v145
  %v159 = vpack.c.b16 %v148, %v147
  %v160 = vpack.c.b16 %v150, %v149
  %v161 = vpack.c.b16 %v152, %v151
  %v162 = vpack.c.b16 %v154, %v153
  %171 = vmatprep.subr.bf16.mxu0 0
  %172 = vmatpush1.bf16.msra.mxu0 %v155
  %173 = vmatprep.subr.bf16.mxu0 0
  %174 = vmatpush1.bf16.msra.mxu0 %v156
  %175 = vmatprep.subr.bf16.mxu0 0
  %176 = vmatpush1.bf16.msra.mxu0 %v157
  %177 = vmatprep.subr.bf16.mxu0 0
  %178 = vmatpush1.bf16.msra.mxu0 %v158
  %179 = vmatprep.subr.bf16.mxu0 0
  %180 = vmatpush1.bf16.msra.mxu0 %v159
  %181 = vmatprep.subr.bf16.mxu0 0
  %182 = vmatpush1.bf16.msra.mxu0 %v160
  %183 = vmatprep.subr.bf16.mxu0 0
  %184 = vmatpush1.bf16.msra.mxu0 %v161
  %185 = vmatprep.subr.bf16.mxu0 0
  %186 = vmatpush1.bf16.msra.mxu0 %v162
  %187 = vmatprep.subr.bf16.mxu0 0
  %188 = vmatpush1.bf16.msra.mxu0 0
  %189 = vmatprep.subr.bf16.mxu0 0
  %190 = vmatpush1.bf16.msra.mxu0 0
  %191 = vmatprep.subr.bf16.mxu0 0
  %192 = vmatpush1.bf16.msra.mxu0 0
  %193 = vmatprep.subr.bf16.mxu0 0
  %194 = vmatpush1.bf16.msra.mxu0 0
  %195 = vmatprep.subr.bf16.mxu0 0
  %196 = vmatpush1.bf16.msra.mxu0 0
  %197 = vmatprep.subr.bf16.mxu0 0
  %198 = vmatpush1.bf16.msra.mxu0 0
  %199 = vmatprep.subr.bf16.mxu0 0
  %200 = vmatpush1.bf16.msra.mxu0 0
  %201 = vmatprep.subr.bf16.mxu0 0
  %202 = vmatpush1.bf16.msra.mxu0 0
  %203 = vmatprep.mubr.bf16.mxu0 0
  %204 = vmatmul.mubr.bf16.gmra.mrb[0].mxu0 %v107
  %v205 = vpop.f32.mrb[0].mxu0
  %v206 = vadd.f32 0.0, %v205
  %v207 = vpop.f32.mrb[0].mxu0
  %v208 = vpop.f32.mrb[0].mxu0
  %v209 = vadd.f32 0.0, %v208
  %v210 = vpop.f32.mrb[0].mxu0
  %211 = vmatprep.mubr.bf16.mxu0 0
  %212 = vmatmul.mubr.bf16.gmra.mrb[0].mxu0 %v108
  %v213 = vpop.f32.mrb[0].mxu0
  %v214 = vadd.f32 0.0, %v213
  %v215 = vpop.f32.mrb[0].mxu0
  %v216 = vpop.f32.mrb[0].mxu0
  %v217 = vadd.f32 0.0, %v216
  %v218 = vpop.f32.mrb[0].mxu0
  %219 = vmatprep.mubr.bf16.mxu0 0
  %220 = vmatmul.mubr.bf16.gmra.mrb[0].mxu0 %v109
  %v221 = vpop.f32.mrb[0].mxu0
  %v222 = vadd.f32 0.0, %v221
  %v223 = vpop.f32.mrb[0].mxu0
  %v224 = vpop.f32.mrb[0].mxu0
  %v225 = vadd.f32 0.0, %v224
  %v226 = vpop.f32.mrb[0].mxu0
  %227 = vmatprep.mubr.bf16.mxu0 0
  %228 = vmatmul.mubr.bf16.gmra.mrb[0].mxu0 %v110
  %v229 = vpop.f32.mrb[0].mxu0
  %v230 = vadd.f32 0.0, %v229
  %v231 = vpop.f32.mrb[0].mxu0
  %v232 = vpop.f32.mrb[0].mxu0
  %v233 = vadd.f32 0.0, %v232
  %v234 = vpop.f32.mrb[0].mxu0
  %235 = vmatprep.mubr.bf16.mxu0 0
  %236 = vmatmul.mubr.bf16.gmra.mrb[0].mxu0 %v111
  %v237 = vpop.f32.mrb[0].mxu0
  %v238 = vadd.f32 0.0, %v237
  %v239 = vpop.f32.mrb[0].mxu0
  %v240 = vpop.f32.mrb[0].mxu0
  %v241 = vadd.f32 0.0, %v240
  %v242 = vpop.f32.mrb[0].mxu0
  %243 = vmatprep.mubr.bf16.mxu0 0
  %244 = vmatmul.mubr.bf16.gmra.mrb[0].mxu0 %v112
  %v245 = vpop.f32.mrb[0].mxu0
  %v246 = vadd.f32 0.0, %v245
  %v247 = vpop.f32.mrb[0].mxu0
  %v248 = vpop.f32.mrb[0].mxu0
  %v249 = vadd.f32 0.0, %v248
  %v250 = vpop.f32.mrb[0].mxu0
  %251 = vmatprep.mubr.bf16.mxu0 0
  %252 = vmatmul.mubr.bf16.gmra.mrb[0].mxu0 %v113
  %v253 = vpop.f32.mrb[0].mxu0
  %v254 = vadd.f32 0.0, %v253
  %v255 = vpop.f32.mrb[0].mxu0
  %v256 = vpop.f32.mrb[0].mxu0
  %v257 = vadd.f32 0.0, %v256
  %v258 = vpop.f32.mrb[0].mxu0
  %259 = vmatprep.mubr.bf16.mxu0 0
  %260 = vmatmul.mubr.bf16.gmra.mrb[0].mxu0 %v114
  %v261 = vpop.f32.mrb[0].mxu0
  %v262 = vadd.f32 0.0, %v261
  %v263 = vpop.f32.mrb[0].mxu0
  %v264 = vpop.f32.mrb[0].mxu0
  %v265 = vadd.f32 0.0, %v264
  %v266 = vpop.f32.mrb[0].mxu0
  %267 = vdwg.mxu0
  %v268 = vpack.c.bf16 %v209, %v206
  %v269 = vpack.c.bf16 %v217, %v214
  %v270 = vpack.c.bf16 %v225, %v222
  %v271 = vpack.c.bf16 %v233, %v230
  %v272 = vpack.c.bf16 %v241, %v238
  %v273 = vpack.c.bf16 %v249, %v246
  %v274 = vpack.c.bf16 %v257, %v254
  %v275 = vpack.c.bf16 %v265, %v262
  %v276 = vld [vmem:[#allocation2] sm:$0xff]
  %v277 = vld [vmem:[#allocation2 + $0x8] sm:$0xff]
  %v278 = vld [vmem:[#allocation2 + $0x10] sm:$0xff]
  %v279 = vld [vmem:[#allocation2 + $0x18] sm:$0xff]
  %v280 = vld [vmem:[#allocation2 + $0x20] sm:$0xff]
  %v281 = vld [vmem:[#allocation2 + $0x28] sm:$0xff]
  %v282 = vld [vmem:[#allocation2 + $0x30] sm:$0xff]
  %v283 = vld [vmem:[#allocation2 + $0x38] sm:$0xff]
  %v284 = vld [vmem:[#allocation2 + $0x40] sm:$0xff]
  %v285 = vld [vmem:[#allocation2 + $0x48] sm:$0xff]
  %v286 = vld [vmem:[#allocation2 + $0x50] sm:$0xff]
  %v287 = vld [vmem:[#allocation2 + $0x58] sm:$0xff]
  %v288 = vld [vmem:[#allocation2 + $0x60] sm:$0xff]
  %v289 = vld [vmem:[#allocation2 + $0x68] sm:$0xff]
  %v290 = vld [vmem:[#allocation2 + $0x70] sm:$0xff]
  %v291 = vld [vmem:[#allocation2 + $0x78] sm:$0xff]
  %v292 = vld [vmem:[%s0] sm:$0xf]
  %v293 = vld [vmem:[%s0 + $0x4] sm:$0xf]
  %v294 = vld [vmem:[%s0 + $0x8] sm:$0xf]
  %v295 = vld [vmem:[%s0 + $0xc] sm:$0xf]
  %v296 = vld [vmem:[%s0 + $0x10] sm:$0xf]
  %v297 = vld [vmem:[%s0 + $0x14] sm:$0xf]
  %v298 = vld [vmem:[%s0 + $0x18] sm:$0xf]
  %v299 = vld [vmem:[%s0 + $0x1c] sm:$0xf]
  %v300 = vld [vmem:[%s0 + $0x20] sm:$0xf]
  %v301 = vld [vmem:[%s0 + $0x24] sm:$0xf]
  %v302 = vld [vmem:[%s0 + $0x28] sm:$0xf]
  %v303 = vld [vmem:[%s0 + $0x2c] sm:$0xf]
  %v304 = vld [vmem:[%s0 + $0x30] sm:$0xf]
  %v305 = vld [vmem:[%s0 + $0x34] sm:$0xf]
  %v306 = vld [vmem:[%s0 + $0x38] sm:$0xf]
  %v307 = vld [vmem:[%s0 + $0x3c] sm:$0xf]
  %v324 = vunpack.c.l.b16 %v292
  %v325 = vunpack.c.l.b16 %v293
  %v326 = vunpack.c.l.b16 %v294
  %v327 = vunpack.c.l.b16 %v295
  %v328 = vunpack.c.l.b16 %v296
  %v329 = vunpack.c.l.b16 %v297
  %v330 = vunpack.c.l.b16 %v298
  %v331 = vunpack.c.l.b16 %v299
  %v332 = vunpack.c.l.b16 %v300
  %v333 = vunpack.c.l.b16 %v301
  %v334 = vunpack.c.l.b16 %v302
  %v335 = vunpack.c.l.b16 %v303
  %v336 = vunpack.c.l.b16 %v304
  %v337 = vunpack.c.l.b16 %v305
  %v338 = vunpack.c.l.b16 %v306
  %v339 = vunpack.c.l.b16 %v307
  %v340 = vpack.c.b16 %v325, %v324
  %v341 = vpack.c.b16 %v327, %v326
  %v342 = vpack.c.b16 %v329, %v328
  %v343 = vpack.c.b16 %v331, %v330
  %v344 = vpack.c.b16 %v333, %v332
  %v345 = vpack.c.b16 %v335, %v334
  %v346 = vpack.c.b16 %v337, %v336
  %v347 = vpack.c.b16 %v339, %v338
  %356 = vmatprep.subr.bf16.mxu0 0
  %357 = vmatpush1.bf16.msra.mxu0 %v268
  %358 = vmatprep.subr.bf16.mxu0 0
  %359 = vmatpush1.bf16.msra.mxu0 %v269
  %360 = vmatprep.subr.bf16.mxu0 0
  %361 = vmatpush1.bf16.msra.mxu0 %v270
  %362 = vmatprep.subr.bf16.mxu0 0
  %363 = vmatpush1.bf16.msra.mxu0 %v271
  %364 = vmatprep.subr.bf16.mxu0 0
  %365 = vmatpush1.bf16.msra.mxu0 %v272
  %366 = vmatprep.subr.bf16.mxu0 0
  %367 = vmatpush1.bf16.msra.mxu0 %v273
  %368 = vmatprep.subr.bf16.mxu0 0
  %369 = vmatpush1.bf16.msra.mxu0 %v274
  %370 = vmatprep.subr.bf16.mxu0 0
  %371 = vmatpush1.bf16.msra.mxu0 %v275
  %372 = vmatprep.subr.bf16.mxu0 0
  %373 = vmatpush1.bf16.msra.mxu0 0
  %374 = vmatprep.subr.bf16.mxu0 0
  %375 = vmatpush1.bf16.msra.mxu0 0
  %376 = vmatprep.subr.bf16.mxu0 0
  %377 = vmatpush1.bf16.msra.mxu0 0
  %378 = vmatprep.subr.bf16.mxu0 0
  %379 = vmatpush1.bf16.msra.mxu0 0
  %380 = vmatprep.subr.bf16.mxu0 0
  %381 = vmatpush1.bf16.msra.mxu0 0
  %382 = vmatprep.subr.bf16.mxu0 0
  %383 = vmatpush1.bf16.msra.mxu0 0
  %384 = vmatprep.subr.bf16.mxu0 0
  %385 = vmatpush1.bf16.msra.mxu0 0
  %386 = vmatprep.subr.bf16.mxu0 0
  %387 = vmatpush1.bf16.msra.mxu0 0
  %388 = vmatprep.mubr.bf16.mxu0 0
  %389 = vmatmul.mubr.bf16.gmra.mrb[0].mxu0 %v340
  %v390 = vpop.f32.mrb[0].mxu0
  %v391 = vadd.f32 0.0, %v390
  %v392 = vpop.f32.mrb[0].mxu0
  %v393 = vpop.f32.mrb[0].mxu0
  %v394 = vadd.f32 0.0, %v393
  %v395 = vpop.f32.mrb[0].mxu0
  %396 = vmatprep.mubr.bf16.mxu0 0
  %397 = vmatmul.mubr.bf16.gmra.mrb[0].mxu0 %v341
  %v398 = vpop.f32.mrb[0].mxu0
  %v399 = vadd.f32 0.0, %v398
  %v400 = vpop.f32.mrb[0].mxu0
  %v401 = vpop.f32.mrb[0].mxu0
  %v402 = vadd.f32 0.0, %v401
  %v403 = vpop.f32.mrb[0].mxu0
  %404 = vmatprep.mubr.bf16.mxu0 0
  %405 = vmatmul.mubr.bf16.gmra.mrb[0].mxu0 %v342
  %v406 = vpop.f32.mrb[0].mxu0
  %v407 = vadd.f32 0.0, %v406
  %v408 = vpop.f32.mrb[0].mxu0
  %v409 = vpop.f32.mrb[0].mxu0
  %v410 = vadd.f32 0.0, %v409
  %v411 = vpop.f32.mrb[0].mxu0
  %412 = vmatprep.mubr.bf16.mxu0 0
  %413 = vmatmul.mubr.bf16.gmra.mrb[0].mxu0 %v343
  %v414 = vpop.f32.mrb[0].mxu0
  %v415 = vadd.f32 0.0, %v414
  %v416 = vpop.f32.mrb[0].mxu0
  %v417 = vpop.f32.mrb[0].mxu0
  %v418 = vadd.f32 0.0, %v417
  %v419 = vpop.f32.mrb[0].mxu0
  %420 = vmatprep.mubr.bf16.mxu0 0
  %421 = vmatmul.mubr.bf16.gmra.mrb[0].mxu0 %v344
  %v422 = vpop.f32.mrb[0].mxu0
  %v423 = vadd.f32 0.0, %v422
  %v424 = vpop.f32.mrb[0].mxu0
  %v425 = vpop.f32.mrb[0].mxu0
  %v426 = vadd.f32 0.0, %v425
  %v427 = vpop.f32.mrb[0].mxu0
  %428 = vmatprep.mubr.bf16.mxu0 0
  %429 = vmatmul.mubr.bf16.gmra.mrb[0].mxu0 %v345
  %v430 = vpop.f32.mrb[0].mxu0
  %v431 = vadd.f32 0.0, %v430
  %v432 = vpop.f32.mrb[0].mxu0
  %v433 = vpop.f32.mrb[0].mxu0
  %v434 = vadd.f32 0.0, %v433
  %v435 = vpop.f32.mrb[0].mxu0
  %436 = vmatprep.mubr.bf16.mxu0 0
  %437 = vmatmul.mubr.bf16.gmra.mrb[0].mxu0 %v346
  %v438 = vpop.f32.mrb[0].mxu0
  %v439 = vadd.f32 0.0, %v438
  %v440 = vpop.f32.mrb[0].mxu0
  %v441 = vpop.f32.mrb[0].mxu0
  %v442 = vadd.f32 0.0, %v441
  %v443 = vpop.f32.mrb[0].mxu0
  %444 = vmatprep.mubr.bf16.mxu0 0
  %445 = vmatmul.mubr.bf16.gmra.mrb[0].mxu0 %v347
  %v446 = vpop.f32.mrb[0].mxu0
  %v447 = vadd.f32 0.0, %v446
  %v448 = vpop.f32.mrb[0].mxu0
  %v449 = vpop.f32.mrb[0].mxu0
  %v450 = vadd.f32 0.0, %v449
  %v451 = vpop.f32.mrb[0].mxu0
  %452 = vdwg.mxu0
  %v453 = vadd.f32 %v276, %v391
  %v454 = vadd.f32 %v277, %v394
  %v455 = vadd.f32 %v278, %v399
  %v456 = vadd.f32 %v279, %v402
  %v457 = vadd.f32 %v280, %v407
  %v458 = vadd.f32 %v281, %v410
  %v459 = vadd.f32 %v282, %v415
  %v460 = vadd.f32 %v283, %v418
  %v461 = vadd.f32 %v284, %v423
  %v462 = vadd.f32 %v285, %v426
  %v463 = vadd.f32 %v286, %v431
  %v464 = vadd.f32 %v287, %v434
  %v465 = vadd.f32 %v288, %v439
  %v466 = vadd.f32 %v289, %v442
  %v467 = vadd.f32 %v290, %v447
  %v468 = vadd.f32 %v291, %v450
  %469 = vst [vmem:[#allocation2] sm:$0xff] %v453
  %470 = vst [vmem:[#allocation2 + $0x8] sm:$0xff] %v454
  %471 = vst [vmem:[#allocation2 + $0x10] sm:$0xff] %v455
  %472 = vst [vmem:[#allocation2 + $0x18] sm:$0xff] %v456
  %473 = vst [vmem:[#allocation2 + $0x20] sm:$0xff] %v457
  %474 = vst [vmem:[#allocation2 + $0x28] sm:$0xff] %v458
  %475 = vst [vmem:[#allocation2 + $0x30] sm:$0xff] %v459
  %476 = vst [vmem:[#allocation2 + $0x38] sm:$0xff] %v460
  %477 = vst [vmem:[#allocation2 + $0x40] sm:$0xff] %v461
  %478 = vst [vmem:[#allocation2 + $0x48] sm:$0xff] %v462
  %479 = vst [vmem:[#allocation2 + $0x50] sm:$0xff] %v463
  %480 = vst [vmem:[#allocation2 + $0x58] sm:$0xff] %v464
  %481 = vst [vmem:[#allocation2 + $0x60] sm:$0xff] %v465
  %482 = vst [vmem:[#allocation2 + $0x68] sm:$0xff] %v466
  %483 = vst [vmem:[#allocation2 + $0x70] sm:$0xff] %v467
  %484 = vst [vmem:[#allocation2 + $0x78] sm:$0xff] %v468
  // Predicated region
  $region22: #{gcn_forward.3} parent=0 // pred_check
    %p485 = pneg %p18
  $region23: #{gcn_forward.3} parent=0 // pred_check_branch
    %487 = sbr.rel (%p485) target = $region25
  $region24: #{gcn_forward.3} parent=0 // pred_region
    %v488 = vld [vmem:[#allocation2] sm:$0xff]
    %v489 = vld [vmem:[#allocation2 + $0x8] sm:$0xff]
    %v490 = vld [vmem:[#allocation2 + $0x10] sm:$0xff]
    %v491 = vld [vmem:[#allocation2 + $0x18] sm:$0xff]
    %v492 = vld [vmem:[#allocation2 + $0x20] sm:$0xff]
    %v493 = vld [vmem:[#allocation2 + $0x28] sm:$0xff]
    %v494 = vld [vmem:[#allocation2 + $0x30] sm:$0xff]
    %v495 = vld [vmem:[#allocation2 + $0x38] sm:$0xff]
    %v496 = vld [vmem:[#allocation2 + $0x40] sm:$0xff]
    %v497 = vld [vmem:[#allocation2 + $0x48] sm:$0xff]
    %v498 = vld [vmem:[#allocation2 + $0x50] sm:$0xff]
    %v499 = vld [vmem:[#allocation2 + $0x58] sm:$0xff]
    %v500 = vld [vmem:[#allocation2 + $0x60] sm:$0xff]
    %v501 = vld [vmem:[#allocation2 + $0x68] sm:$0xff]
    %v502 = vld [vmem:[#allocation2 + $0x70] sm:$0xff]
    %v503 = vld [vmem:[#allocation2 + $0x78] sm:$0xff]
    %v504 = vld [vmem:[%s3] sm:$0x1]
    %v506 = vlaneseq
    %v507 = vshrl.u32 %v506, 7
    %v508 = vsub.s32 0, %v507
    %v509 = vrot.slane %v504, %v508
    %v511 = vadd.f32 %v488, %v509
    %v512 = vadd.f32 %v489, %v509
    %v513 = vadd.f32 %v490, %v509
    %v514 = vadd.f32 %v491, %v509
    %v515 = vadd.f32 %v492, %v509
    %v516 = vadd.f32 %v493, %v509
    %v517 = vadd.f32 %v494, %v509
    %v518 = vadd.f32 %v495, %v509
    %v519 = vadd.f32 %v496, %v509
    %v520 = vadd.f32 %v497, %v509
    %v521 = vadd.f32 %v498, %v509
    %v522 = vadd.f32 %v499, %v509
    %v523 = vadd.f32 %v500, %v509
    %v524 = vadd.f32 %v501, %v509
    %v525 = vadd.f32 %v502, %v509
    %v526 = vadd.f32 %v503, %v509
    %v527 = vmax.f32 %v511, 0.0
    %v528 = vmax.f32 %v512, 0.0
    %v529 = vmax.f32 %v513, 0.0
    %v530 = vmax.f32 %v514, 0.0
    %v531 = vmax.f32 %v515, 0.0
    %v532 = vmax.f32 %v516, 0.0
    %v533 = vmax.f32 %v517, 0.0
    %v534 = vmax.f32 %v518, 0.0
    %v535 = vmax.f32 %v519, 0.0
    %v536 = vmax.f32 %v520, 0.0
    %v537 = vmax.f32 %v521, 0.0
    %v538 = vmax.f32 %v522, 0.0
    %v539 = vmax.f32 %v523, 0.0
    %v540 = vmax.f32 %v524, 0.0
    %v541 = vmax.f32 %v525, 0.0
    %v542 = vmax.f32 %v526, 0.0
    %v543 = vpack.c.bf16 %v528, %v527
    %v544 = vpack.c.bf16 %v530, %v529
    %v545 = vpack.c.bf16 %v532, %v531
    %v546 = vpack.c.bf16 %v534, %v533
    %v547 = vpack.c.bf16 %v536, %v535
    %v548 = vpack.c.bf16 %v538, %v537
    %v549 = vpack.c.bf16 %v540, %v539
    %v550 = vpack.c.bf16 %v542, %v541
    %v559 = vunpack.c.l.b16 %v543
    %v560 = vunpack.c.h.b16 %v543
    %v561 = vunpack.c.l.b16 %v544
    %v562 = vunpack.c.h.b16 %v544
    %v563 = vunpack.c.l.b16 %v545
    %v564 = vunpack.c.h.b16 %v545
    %v565 = vunpack.c.l.b16 %v546
    %v566 = vunpack.c.h.b16 %v546
    %v567 = vunpack.c.l.b16 %v547
    %v568 = vunpack.c.h.b16 %v547
    %v569 = vunpack.c.l.b16 %v548
    %v570 = vunpack.c.h.b16 %v548
    %v571 = vunpack.c.l.b16 %v549
    %v572 = vunpack.c.h.b16 %v549
    %v573 = vunpack.c.l.b16 %v550
    %v574 = vunpack.c.h.b16 %v550
    %v575 = vpack.c.b16 %v559, %v559
    %v576 = vpack.c.b16 %v560, %v560
    %v577 = vpack.c.b16 %v561, %v561
    %v578 = vpack.c.b16 %v562, %v562
    %v579 = vpack.c.b16 %v563, %v563
    %v580 = vpack.c.b16 %v564, %v564
    %v581 = vpack.c.b16 %v565, %v565
    %v582 = vpack.c.b16 %v566, %v566
    %v583 = vpack.c.b16 %v567, %v567
    %v584 = vpack.c.b16 %v568, %v568
    %v585 = vpack.c.b16 %v569, %v569
    %v586 = vpack.c.b16 %v570, %v570
    %v587 = vpack.c.b16 %v571, %v571
    %v588 = vpack.c.b16 %v572, %v572
    %v589 = vpack.c.b16 %v573, %v573
    %v590 = vpack.c.b16 %v574, %v574
    %607 = vst [vmem:[%s4] sm:$0xf] %v575
    %608 = vst [vmem:[%s4 + $0x4] sm:$0xf] %v576
    %609 = vst [vmem:[%s4 + $0x8] sm:$0xf] %v577
    %610 = vst [vmem:[%s4 + $0xc] sm:$0xf] %v578
    %611 = vst [vmem:[%s4 + $0x10] sm:$0xf] %v579
    %612 = vst [vmem:[%s4 + $0x14] sm:$0xf] %v580
    %613 = vst [vmem:[%s4 + $0x18] sm:$0xf] %v581
    %614 = vst [vmem:[%s4 + $0x1c] sm:$0xf] %v582
    %615 = vst [vmem:[%s4 + $0x20] sm:$0xf] %v583
    %616 = vst [vmem:[%s4 + $0x24] sm:$0xf] %v584
    %617 = vst [vmem:[%s4 + $0x28] sm:$0xf] %v585
    %618 = vst [vmem:[%s4 + $0x2c] sm:$0xf] %v586
    %619 = vst [vmem:[%s4 + $0x30] sm:$0xf] %v587
    %620 = vst [vmem:[%s4 + $0x34] sm:$0xf] %v588
    %621 = vst [vmem:[%s4 + $0x38] sm:$0xf] %v589
    %622 = vst [vmem:[%s4 + $0x3c] sm:$0xf] %v590
  $region25: #{gcn_forward.3} parent=0 // pred_fallthru
    _
  // Predicated region
  $region26: #{gcn_forward.3} parent=0 // pred_check
    _
  $region27: #{gcn_forward.3} parent=0 // pred_check_branch
    %624 = sbr.rel (0) target = $region29
  $region28: #{gcn_forward.3} parent=0 // pred_region
    _
  $region29: #{gcn_forward.3} parent=0 // pred_fallthru
    _
  // Predicated region
  $region30: #{gcn_forward.3} parent=0 // pred_check
    _
  $region31: #{gcn_forward.3} parent=0 // pred_check_branch
    %626 = sbr.rel (0) target = $region33
  $region32: #{gcn_forward.3} parent=0 // pred_region
    _
  $region33: #{gcn_forward.3} parent=0 // pred_fallthru
    _

</llo_original>
